<compile_context>
chip_gen: v5e
topology: v5e:2x2
jax: 0.10.0
libtpu: 0.0.40
codegen_flags: <defaults>
</compile_context>

<pallas_src>
import math
from functools import partial

import jax
import jax.numpy as jnp
from jax.experimental import pallas as pl
from jax.experimental.pallas import tpu as pltpu


def _round_up(x, m):
    return ((x + m - 1) // m) * m


def _tpu_info():
    try:
        return pltpu.get_tpu_info()
    except Exception:
        return None


def _vmem_capacity_bytes():
    info = _tpu_info()
    cap = getattr(info, "vmem_capacity_bytes", None) if info is not None else None
    if cap:
        return int(cap)
    return 64 << 20  # conservative (v7x-sized) fallback


def _num_tensorcores():
    info = _tpu_info()
    if info is not None:
        for name in ("num_cores", "cores_per_chip", "num_tensorcores", "core_count"):
            v = getattr(info, name, None)
            if v:
                try:
                    return int(v)
                except Exception:
                    pass
    return 1  # safe default: never force a megacore split


def _skip_linear_kernel(x_ref, w_ref, b_ref, o_ref, *, tn, matmul_dtype=None):
    # x_ref: (tm, Hp)  full-width row tile
    # w_ref: (Hp, tn)  weight block, already in [in, out] layout
    # b_ref: (1, tn)   bias block
    # o_ref: (tm, tn)  output block
    x = x_ref[...]
    xm = x if matmul_dtype is None else x.astype(matmul_dtype)
    y = jnp.dot(xm, w_ref[...], preferred_element_type=jnp.float32)  # MXU

    # Skip term: the tn output columns of this block correspond to input
    # columns [j*tn, j*tn + tn) of x.  tn always divides Hp -> in bounds.
    if tn == x.shape[1]:
        x_skip = x
    else:
        col0 = pl.multiple_of(pl.program_id(1) * tn, 128)
        x_skip = x_ref[:, pl.ds(col0, tn)]

    out = x_skip.astype(jnp.float32) + y + b_ref[...].astype(jnp.float32)
    o_ref[...] = out.astype(o_ref.dtype)


def skip_connection_linear(x, weight, bias, *, matmul_dtype=None):
    """out = x + x @ weight.T + bias, with weight in PyTorch [out, in] layout."""
    B, S, H = x.shape
    M = B * S
    dtype = x.dtype
    itemsize = jnp.dtype(dtype).itemsize

    # ---- lane (H) padding: only when H is not a multiple of 128 --------------
    Hp = _round_up(H, 128)
    x2 = x.reshape(M, H)
    w_t = weight.T  # one-time [out,in] -> [in,out] transpose, amortized per call
    b1 = bias
    if Hp != H:
        # Zero pads keep the math exact (padded lanes contribute 0 to the dot).
        x2 = jnp.pad(x2, ((0, 0), (0, Hp - H)))
        w_t = jnp.pad(w_t, ((0, Hp - H), (0, Hp - H)))
        b1 = jnp.pad(bias, ((0, Hp - H),))
    if matmul_dtype is not None:
        w_t = w_t.astype(matmul_dtype)  # also halves the resident weight footprint
    b2 = b1.reshape(1, Hp)
    w_itemsize = jnp.dtype(w_t.dtype).itemsize

    # ---- generation-aware VMEM budget ----------------------------------------
    vmem_cap = _vmem_capacity_bytes()
    budget = (vmem_cap * 55) // 100  # ~72 MiB on v5e/v6e, ~36 MiB on v7x

    # ---- weight-column (N) tiling only if the resident weight doesn't fit ----
    if Hp * Hp * w_itemsize <= budget // 2:
        tn, steps_n = Hp, 1
        w_vmem = Hp * Hp * w_itemsize            # single-buffered resident weight
        w_mode = pl.Buffered(1)
        b_mode = pl.Buffered(1)
    else:
        cols = max(128, (((budget // 2) // (2 * Hp * w_itemsize)) // 128) * 128)
        tn = min(Hp, int(cols))
        while Hp % tn != 0:                      # keep lane blocks exact
            tn -= 128
        tn = max(tn, 128)
        steps_n = Hp // tn
        w_vmem = 2 * Hp * tn * w_itemsize        # double-buffered weight stream
        w_mode = None
        b_mode = None

    def _spec(shape, imap, mode):
        if mode is None:
            return pl.BlockSpec(shape, imap)
        return pl.BlockSpec(shape, imap, pipeline_mode=mode)

    # ---- balanced row tile ----------------------------------------------------
    per_row = (2 * Hp + 2 * tn) * itemsize        # double-buffered x + out tiles
    rows = max(8, (budget - w_vmem) // per_row)
    rows = (rows // 8) * 8
    lane_rows = _round_up(max(1, (1 << 20) // (Hp * itemsize)), 8)  # ~1 MiB x tile
    row_cap = int(min(2048, max(512, lane_rows)))
    row_cap = int(max(8, min(row_cap, rows)))

    steps_m = pl.cdiv(M, row_cap)
    # Megacore (v7x only): even step counts with per-core tiles >= 256 rows.
    if _num_tensorcores() >= 2 and steps_m % 2 == 1 and pl.cdiv(M, steps_m + 1) >= 256:
        steps_m += 1
    if steps_m == 1:
        tm = M                                   # full-dim block: no masked rows
    else:
        tm = _round_up(pl.cdiv(M, steps_m), 8)

    # ---- advisory hints --------------------------------------------------------
    cost = pl.CostEstimate(
        flops=2 * M * H * H + 2 * M * H,
        transcendentals=0,
        bytes_accessed=int(
            itemsize * (2 * steps_m * tm * Hp)                               # x + out
            + w_itemsize * Hp * Hp * (steps_m if steps_n > 1 else 1)         # weight
            + itemsize * Hp                                                  # bias
        ),
    )
    vmem_need = w_vmem + 2 * tn * itemsize + (2 * tm * Hp + 2 * tm * tn) * itemsize
    vmem_limit = int(min(max(vmem_need + (4 << 20), 32 << 20), (vmem_cap * 3) // 4))

    kernel = partial(_skip_linear_kernel, tn=tn, matmul_dtype=matmul_dtype)
    out2 = pl.pallas_call(
        kernel,
        out_shape=jax.ShapeDtypeStruct((M, Hp), dtype),
        grid_spec=pltpu.PrefetchScalarGridSpec(
            num_scalar_prefetch=0,
            grid=(steps_m, steps_n),
            in_specs=[
                pl.BlockSpec((tm, Hp), lambda i, j: (i, 0)),   # x row tile
                _spec((Hp, tn), lambda i, j: (0, j), w_mode),  # weight [in, out]
                _spec((1, tn), lambda i, j: (0, j), b_mode),   # bias
            ],
            out_specs=pl.BlockSpec((tm, tn), lambda i, j: (i, j)),
        ),
        compiler_params=pltpu.CompilerParams(
            dimension_semantics=("parallel", "parallel"),
            vmem_limit_bytes=vmem_limit,
        ),
        cost_estimate=cost,
    )(x2, w_t, b2)

    if Hp != H:
        out2 = out2[:, :H]
    return out2.reshape(B, S, H)


# TODO(synk): SkipConnection wraps an arbitrary nn.Module; only the
# Linear(hidden, hidden) hot path is fused here -- other wrapped modules
# (e.g. MultiHeadAttention) need their own kernels and a plain `x + module(x)`.


if __name__ == "__main__":
    key = jax.random.PRNGKey(0)

    def run_case(B, S, H):
        kx, kw, kb = jax.random.split(
            jax.random.fold_in(key, B * 10000 + S * 100 + H), 3)
        x = jax.random.normal(kx, (B, S, H), dtype=jnp.float32)
        # Deterministic init mirroring nn.Linear's uniform(-1/sqrt(in), 1/sqrt(in)).
        bound = 1.0 / math.sqrt(H)
        weight = jax.random.uniform(kw, (H, H), dtype=jnp.float32,
                                    minval=-bound, maxval=bound)  # PyTorch [out, in]
        bias = jax.random.uniform(kb, (H,), dtype=jnp.float32,
                                  minval=-bound, maxval=bound)

        out = jax.block_until_ready(skip_connection_linear(x, weight, bias))

        # Reference: x + Linear(x) in plain JAX.
        ref = x + (jnp.einsum("bsh,oh->bso", x, weight) + bias)
        assert jnp.allclose(out, ref, atol=1e-5, rtol=1e-5), f"mismatch ({B},{S},{H})"

    run_case(2, 8, 32)     # canonical small shape (H padded to 128 lanes)
    run_case(3, 7, 32)     # ragged row count M=21, single full-dim row block
    run_case(4, 33, 128)   # lane-aligned H, M=132 not a multiple of 8
    run_case(5, 413, 32)   # M=2065 > row cap -> multi-step grid, masked last tile

    print("KERNEL_OK")
</pallas_src>

<mosaic_0001>
module attributes {stable_mosaic.version = 11 : i64} {
  func.func @_skip_linear_kernel(%arg0: i32, %arg1: i32, %arg2: memref<16x128xf32, #tpu.memory_space<vmem>>, %arg3: memref<128x128xf32, #tpu.memory_space<vmem>>, %arg4: memref<1x128xf32, #tpu.memory_space<vmem>>, %arg5: memref<16x128xf32, #tpu.memory_space<vmem>>) attributes {dimension_semantics = [#tpu.dimension_semantics<parallel>, #tpu.dimension_semantics<parallel>], iteration_bounds = array<i64: 1, 1>, scalar_prefetch = 0 : i64, scratch_operands = 0 : i64, tpu.core_type = #tpu.core_type<tc>, window_params = [{transform_indices = @transform_0, window_bounds = array<i64: 16, 128>}, {pipeline_mode = #tpu.pipeline_mode<synchronous>, transform_indices = @transform_1, window_bounds = array<i64: 128, 128>}, {pipeline_mode = #tpu.pipeline_mode<synchronous>, transform_indices = @transform_2, window_bounds = array<i64: 1, 128>}, {transform_indices = @transform_3, window_bounds = array<i64: 16, 128>}]} {
    %c0 = arith.constant 0 : index
    %c0_0 = arith.constant 0 : index
    %0 = vector.load %arg2[%c0, %c0_0] : memref<16x128xf32, #tpu.memory_space<vmem>>, vector<16x128xf32>
    %c0_1 = arith.constant 0 : index
    %c0_2 = arith.constant 0 : index
    %1 = vector.load %arg3[%c0_1, %c0_2] : memref<128x128xf32, #tpu.memory_space<vmem>>, vector<128x128xf32>
    %cst = arith.constant dense<0.000000e+00> : vector<16x128xf32>
    %2 = tpu.matmul %0, %1, %cst {dimension_numbers = #tpu.dot_dimension_numbers<[1], [0], [0], [1], [0, 0, 1, 1], [], []>} : vector<16x128xf32>, vector<128x128xf32>, vector<16x128xf32> -> vector<16x128xf32>
    %3 = arith.addf %0, %2 : vector<16x128xf32>
    %c0_3 = arith.constant 0 : index
    %c0_4 = arith.constant 0 : index
    %4 = vector.load %arg4[%c0_3, %c0_4] : memref<1x128xf32, #tpu.memory_space<vmem>>, vector<1x128xf32>
    %5 = vector.broadcast %4 : vector<1x128xf32> to vector<16x128xf32>
    %6 = arith.addf %3, %5 : vector<16x128xf32>
    %c0_5 = arith.constant 0 : index
    %c0_6 = arith.constant 0 : index
    %7 = vector.load %arg5[%c0_5, %c0_6] : memref<16x128xf32, #tpu.memory_space<vmem>>, vector<16x128xf32>
    tpu.vector_store %arg5[%c0_5, %c0_6], %6 {strides = array<i32>} : memref<16x128xf32, #tpu.memory_space<vmem>>, vector<16x128xf32>,
    return
  }
  func.func @transform_0(%arg0: i32, %arg1: i32) -> (i32, i32) {
    %c0_i32 = arith.constant 0 : i32
    %c0_i32_0 = arith.constant 0 : i32
    return %arg0, %c0_i32 : i32, i32
  }
  func.func @transform_1(%arg0: i32, %arg1: i32) -> (i32, i32) {
    %c0_i32 = arith.constant 0 : i32
    %c0_i32_0 = arith.constant 0 : i32
    return %c0_i32, %arg1 : i32, i32
  }
  func.func @transform_2(%arg0: i32, %arg1: i32) -> (i32, i32) {
    %c0_i32 = arith.constant 0 : i32
    %c0_i32_0 = arith.constant 0 : i32
    return %c0_i32, %arg1 : i32, i32
  }
  func.func @transform_3(%arg0: i32, %arg1: i32) -> (i32, i32) {
    %c0_i32 = arith.constant 0 : i32
    return %arg0, %arg1 : i32, i32
  }
}

</mosaic_0001>

<llo_original>
// kernel: tpu_custom_call.1
$region0: #{tpu_custom_call.1}
  #allocation0 [shape = 'u32[]', space=smem, size = 0x4, offset = 0x4, fixed_abs, tag = 'smem constant byte address 0x4 - core index']
  #allocation1 [shape = 'u32[72,128]{1,0:T(1,128)}', space=vmem, size = 0x9000, scoped, tag = 'internal scratch']
  %s0 = inlined_call_operand.hbm [shape: f32[16,128], index: 0, kind: input, shape index: {}]
  %s1 = inlined_call_operand.hbm [shape: f32[128,128], index: 1, kind: input, shape index: {}]
  %s2 = inlined_call_operand.vmem [shape: f32[1,128], index: 2, kind: input, shape index: {}]
  %s3 = inlined_call_operand.hbm [shape: f32[16,128], index: 3, kind: output, shape index: {}]
  %s4 = sld [smem:[#allocation0]]
  $region30: #{tpu_custom_call.1} parent=0
    _
  %s6 = ssub.s32 1, %s4
  %s7 = scalar_select 0, %s6, %s4
  $region1: #{tpu_custom_call.1} parent=0
    #allocation2 [shape = 'u8[8192]{0}', space=vmem, size = 0x2000, scoped, tag = 'input window, operand 0, single buffered']
    #allocation3 [shape = 's32[1]{0}', space=sflag, size = 0x4, scoped, tag = 'scoped memory for tpu_custom_call.1']
    #allocation4 [shape = 's32[1]{0}', space=sflag, size = 0x4, scoped, tag = 'scoped memory for tpu_custom_call.1']
    #allocation5 [shape = 'u8[65536]{0}', space=vmem, size = 0x10000, scoped, tag = 'input window, operand 1, single buffered']
    #allocation6 [shape = 's32[1]{0}', space=sflag, size = 0x4, scoped, tag = 'scoped memory for tpu_custom_call.1']
    #allocation7 [shape = 'u8[8192]{0}', space=vmem, size = 0x2000, scoped, tag = 'output window, operand 0, single buffered']
    %8 = vsyncpa [#allocation3], 0
    %9 = vsyncpa [#allocation6], 0
    %10 = vsyncpa [#allocation4], 0
    // Predicated region
    $region2: #{tpu_custom_call.1} parent=1 // pred_check
      _
    $region3: #{tpu_custom_call.1} parent=1 // pred_check_branch
      %12 = sbr.rel (0) target = $region5
    $region4: #{tpu_custom_call.1} parent=1 // pred_region
      %14 = vsyncadd [#allocation3], 0
      %s15 = sshll.u32 %s0, 4
      %s16 = int_to_ptr.hbm [resolvable:$true] %s15
      %s17 = sshll.u32 [#allocation2], 4
      %s18 = int_to_ptr.vmem [resolvable:$true] %s17
      %23 = dma.hbm_to_vmem [thread:$0]  %s16, 256, %s18, [#allocation3], 128, 128, 8
    $region5: #{tpu_custom_call.1} parent=1 // pred_fallthru
      _
    // Predicated region
    $region6: #{tpu_custom_call.1} parent=1 // pred_check
      _
    $region7: #{tpu_custom_call.1} parent=1 // pred_check_branch
      %25 = sbr.rel (0) target = $region9
    $region8: #{tpu_custom_call.1} parent=1 // pred_region
      %27 = vsyncadd [#allocation6], 0
      %s28 = sshll.u32 %s1, 4
      %s29 = int_to_ptr.hbm [resolvable:$true] %s28
      %s30 = sshll.u32 [#allocation5], 4
      %s31 = int_to_ptr.vmem [resolvable:$true] %s30
      %36 = dma.hbm_to_vmem [thread:$0]  %s29, 2048, %s31, [#allocation6], 128, 128, 8
    $region9: #{tpu_custom_call.1} parent=1 // pred_fallthru
      _
    // Predicated region
    $region10: #{tpu_custom_call.1} parent=1 // pred_check
      _
    $region11: #{tpu_custom_call.1} parent=1 // pred_check_branch
      %38 = sbr.rel (0) target = $region13
    $region12: #{tpu_custom_call.1} parent=1 // pred_region
      _
    $region13: #{tpu_custom_call.1} parent=1 // pred_fallthru
      _
    // Predicated region
    $region14: #{tpu_custom_call.1} parent=1 // pred_check
      _
    $region15: #{tpu_custom_call.1} parent=1 // pred_check_branch
      %40 = sbr.rel (0) target = $region17
    $region16: #{tpu_custom_call.1} parent=1 // pred_region
      %42 = dma.done [#allocation3], 256
    $region17: #{tpu_custom_call.1} parent=1 // pred_fallthru
      _
    // Predicated region
    $region18: #{tpu_custom_call.1} parent=1 // pred_check
      _
    $region19: #{tpu_custom_call.1} parent=1 // pred_check_branch
      %44 = sbr.rel (0) target = $region21
    $region20: #{tpu_custom_call.1} parent=1 // pred_region
      %46 = dma.done [#allocation6], 2048
    $region21: #{tpu_custom_call.1} parent=1 // pred_fallthru
      _
    %v47 = vld [vmem:[#allocation2] sm:$0xff]
    %v48 = vld [vmem:[#allocation2 + $0x8] sm:$0xff]
    %v49 = vld [vmem:[#allocation5] sm:$0xff]
    %v50 = vld [vmem:[#allocation5 + $0x8] sm:$0xff]
    %v51 = vld [vmem:[#allocation5 + $0x10] sm:$0xff]
    %v52 = vld [vmem:[#allocation5 + $0x18] sm:$0xff]
    %v53 = vld [vmem:[#allocation5 + $0x20] sm:$0xff]
    %v54 = vld [vmem:[#allocation5 + $0x28] sm:$0xff]
    %v55 = vld [vmem:[#allocation5 + $0x30] sm:$0xff]
    %v56 = vld [vmem:[#allocation5 + $0x38] sm:$0xff]
    %v57 = vld [vmem:[#allocation5 + $0x40] sm:$0xff]
    %v58 = vld [vmem:[#allocation5 + $0x48] sm:$0xff]
    %v59 = vld [vmem:[#allocation5 + $0x50] sm:$0xff]
    %v60 = vld [vmem:[#allocation5 + $0x58] sm:$0xff]
    %v61 = vld [vmem:[#allocation5 + $0x60] sm:$0xff]
    %v62 = vld [vmem:[#allocation5 + $0x68] sm:$0xff]
    %v63 = vld [vmem:[#allocation5 + $0x70] sm:$0xff]
    %v64 = vld [vmem:[#allocation5 + $0x78] sm:$0xff]
    %65 = vmatpush.msra.mxu0 %v64
    %66 = vmatpush.msra.mxu0 %v63
    %67 = vmatpush.msra.mxu0 %v62
    %68 = vmatpush.msra.mxu0 %v61
    %69 = vmatpush.msra.mxu0 %v60
    %70 = vmatpush.msra.mxu0 %v59
    %71 = vmatpush.msra.mxu0 %v58
    %72 = vmatpush.msra.mxu0 %v57
    %73 = vmatpush.msra.mxu0 %v56
    %74 = vmatpush.msra.mxu0 %v55
    %75 = vmatpush.msra.mxu0 %v54
    %76 = vmatpush.msra.mxu0 %v53
    %77 = vmatpush.msra.mxu0 %v52
    %78 = vmatpush.msra.mxu0 %v51
    %79 = vmatpush.msra.mxu0 %v50
    %80 = vmatpush.msra.mxu0 %v49
    %81 = vmatmul.f32.gmra.mxu0 %v47
    %v82 = vpop.f32.mrf.mxu0
    %v83 = vadd.f32 0.0, %v82
    %84 = vmatmul.f32.gmra.mxu0 %v48
    %v85 = vpop.f32.mrf.mxu0
    %v86 = vadd.f32 0.0, %v85
    %87 = vdwg.mxu0
    %v88 = vadd.f32 %v47, %v83
    %v89 = vadd.f32 %v48, %v86
    %v90 = vld [vmem:[%s2] sm:$0x1]
    %v92 = vperm.slane %v90, 0
    %v94 = vadd.f32 %v88, %v92
    %v95 = vadd.f32 %v89, %v92
    %96 = vst [vmem:[#allocation7] sm:$0xff] %v94
    %97 = vst [vmem:[#allocation7 + $0x8] sm:$0xff] %v95
    // Predicated region
    $region22: #{tpu_custom_call.1} parent=1 // pred_check
      _
    $region23: #{tpu_custom_call.1} parent=1 // pred_check_branch
      %99 = sbr.rel (0) target = $region25
    $region24: #{tpu_custom_call.1} parent=1 // pred_region
      %101 = vsyncadd [#allocation4], 0
      %s102 = sshll.u32 [#allocation7], 4
      %s103 = int_to_ptr.vmem [resolvable:$true] %s102
      %s104 = sshll.u32 %s3, 4
      %s105 = int_to_ptr.hbm [resolvable:$true] %s104
      %110 = dma.vmem_to_hbm [thread:$0]  %s103, 256, %s105, [#allocation4], 128, 128, 8
    $region25: #{tpu_custom_call.1} parent=1 // pred_fallthru
      _
    // Predicated region
    $region26: #{tpu_custom_call.1} parent=1 // pred_check
      _
    $region27: #{tpu_custom_call.1} parent=1 // pred_check_branch
      %112 = sbr.rel (0) target = $region29
    $region28: #{tpu_custom_call.1} parent=1 // pred_region
      %114 = dma.done [#allocation4], 256
    $region29: #{tpu_custom_call.1} parent=1 // pred_fallthru
      _
    %115 = vsyncpa [#allocation3], 1
    %116 = vsyncpa [#allocation6], 1
    %117 = vsyncpa [#allocation4], 1

</llo_original>
